<compile_context>
chip_gen: v6e
topology: v6e:2x2x1
jax: 0.10.0
libtpu: 0.0.40
codegen_flags: <defaults>
</compile_context>

<pallas_src>
import math
import jax
import jax.numpy as jnp
from jax.experimental import pallas as pl
from jax.experimental.pallas import tpu as pltpu


def _round_up(n, m):
    return ((n + m - 1) // m) * m


def decoder_kernel(x_ref,
                   w1_ref, b1_ref,
                   w2_ref, b2_ref,
                   w3_ref, b3_ref,
                   w4_ref, b4_ref,
                   o_ref):
    # Whole MLP hot path for one batch tile, entirely in VMEM:
    # 4 MXU matmuls with f32 accumulation + 3 EUP tanh (on real, unpadded lanes).
    h = jnp.tanh(jnp.dot(x_ref[...], w1_ref[...],
                         preferred_element_type=jnp.float32) + b1_ref[...])
    h = jnp.tanh(jnp.dot(h, w2_ref[...],
                         preferred_element_type=jnp.float32) + b2_ref[...])
    h = jnp.tanh(jnp.dot(h, w3_ref[...],
                         preferred_element_type=jnp.float32) + b3_ref[...])
    y = jnp.dot(h, w4_ref[...],
                preferred_element_type=jnp.float32) + b4_ref[...]
    o_ref[...] = y.astype(o_ref.dtype)


def decoder_forward(x, params, *, batch_tile=2048):
    """x: (B, num_units) f32. params: list of (W, b) with W as (in, out), b as (1, out)."""
    (w1, b1), (w2, b2), (w3, b3), (w4, b4) = params
    B, K = x.shape
    h1, h2, h3 = w1.shape[1], w2.shape[1], w3.shape[1]
    out_size = w4.shape[1]

    # --- batch tiling only: multiple of 8 sublanes; never pad feature dims ---
    rb = _round_up(B, 8)
    if rb <= 16:
        TB = rb                                   # tiny batch: single step
    else:
        # Keep >=2 grid steps when possible (lets v7x's 2 TCs split the batch),
        # but cap the tile so huge batches amortize per-step overhead.
        TB = min(batch_tile, _round_up(rb // 2, 8))
    Bp = _round_up(B, TB)
    xp = jnp.pad(x, ((0, Bp - B), (0, 0))) if Bp != B else x   # batch-only pad (cheap)
    grid = (Bp // TB,)

    # Weights/biases: constant block index -> DMA'd once, VMEM-resident across steps.
    const2d = lambda shape: pl.BlockSpec(shape, lambda i: (0, 0))
    in_specs = [
        pl.BlockSpec((TB, K), lambda i: (i, 0)),   # x: streamed per batch tile, real K
        const2d((K, h1)), const2d((1, h1)),
        const2d((h1, h2)), const2d((1, h2)),
        const2d((h2, h3)), const2d((1, h3)),
        const2d((h3, out_size)), const2d((1, out_size)),
    ]
    out_specs = pl.BlockSpec((TB, out_size), lambda i: (i, 0))

    # Honest (actual-traffic) advisory cost estimate.
    w_elems = K * h1 + h1 * h2 + h2 * h3 + h3 * out_size
    b_elems = h1 + h2 + h3 + out_size
    flops = 2 * Bp * w_elems
    transcendentals = Bp * (h1 + h2 + h3)
    bytes_accessed = 4 * (Bp * (K + out_size) + w_elems + b_elems)

    out_padded = pl.pallas_call(
        decoder_kernel,
        out_shape=jax.ShapeDtypeStruct((Bp, out_size), jnp.float32),
        grid=grid,
        in_specs=in_specs,
        out_specs=out_specs,
        compiler_params=pltpu.CompilerParams(
            dimension_semantics=("parallel",),
        ),
        cost_estimate=pl.CostEstimate(
            flops=flops,
            transcendentals=transcendentals,
            bytes_accessed=bytes_accessed,
        ),
    )(xp, w1, b1, w2, b2, w3, b3, w4, b4)

    # Slice away the (batch-only) padding.
    return out_padded[:B] if Bp != B else out_padded


def init_linear(key, fan_in, fan_out):
    """Deterministic PyTorch-style nn.Linear init: U(-1/sqrt(fan_in), 1/sqrt(fan_in))."""
    kw, kb = jax.random.split(key)
    bound = 1.0 / math.sqrt(fan_in)
    # Stored as (in, out) so the kernel computes x @ W directly.
    w = jax.random.uniform(kw, (fan_in, fan_out), jnp.float32, -bound, bound)
    b = jax.random.uniform(kb, (1, fan_out), jnp.float32, -bound, bound)
    return w, b


def make_params(key, num_units, output_size):
    dims = [(num_units, 16), (16, 32), (32, 64), (64, output_size)]
    keys = jax.random.split(key, len(dims))
    return [init_linear(k, fi, fo) for k, (fi, fo) in zip(keys, dims)]


def reference_forward(x, params):
    h = x
    for i, (w, b) in enumerate(params):
        h = jnp.dot(h, w, preferred_element_type=jnp.float32) + b
        if i < len(params) - 1:
            h = jnp.tanh(h)
    return h


if __name__ == "__main__":
    num_units = 8
    output_size = 48
    batch = 2
    # TODO(synk): at batch=2 the forward is launch-overhead bound; for a real B=2
    # deployment, fuse this MLP into the caller / leave it to XLA.

    key = jax.random.PRNGKey(0)
    k_params, k_x = jax.random.split(key)
    params = make_params(k_params, num_units, output_size)
    x = jax.random.normal(k_x, (batch, num_units), jnp.float32)

    out = jax.block_until_ready(decoder_forward(x, params))
    ref = reference_forward(x, params)
    assert out.shape == (batch, output_size)
    assert jnp.allclose(out, ref, atol=1e-4, rtol=1e-4)

    # Larger, non-tile-multiple batch exercises the multi-step grid path
    # (>=2 grid steps -> both v7x TensorCores get work on the "parallel" axis).
    x_big = jax.random.normal(jax.random.PRNGKey(1), (1000, num_units), jnp.float32)
    out_big = jax.block_until_ready(decoder_forward(x_big, params))
    assert out_big.shape == (1000, output_size)
    assert jnp.allclose(out_big, reference_forward(x_big, params), atol=1e-4, rtol=1e-4)

    print("KERNEL_OK")
</pallas_src>

<mosaic_0001>
module attributes {stable_mosaic.version = 11 : i64} {
  func.func @decoder_kernel(%arg0: i32, %arg1: memref<8x8xf32, #tpu.memory_space<vmem>>, %arg2: memref<8x16xf32, #tpu.memory_space<vmem>>, %arg3: memref<1x16xf32, #tpu.memory_space<vmem>>, %arg4: memref<16x32xf32, #tpu.memory_space<vmem>>, %arg5: memref<1x32xf32, #tpu.memory_space<vmem>>, %arg6: memref<32x64xf32, #tpu.memory_space<vmem>>, %arg7: memref<1x64xf32, #tpu.memory_space<vmem>>, %arg8: memref<64x48xf32, #tpu.memory_space<vmem>>, %arg9: memref<1x48xf32, #tpu.memory_space<vmem>>, %arg10: memref<8x48xf32, #tpu.memory_space<vmem>>) attributes {dimension_semantics = [#tpu.dimension_semantics<parallel>], iteration_bounds = array<i64: 1>, scalar_prefetch = 0 : i64, scratch_operands = 0 : i64, tpu.core_type = #tpu.core_type<tc>, window_params = [{transform_indices = @transform_0, window_bounds = array<i64: 8, 8>}, {pipeline_mode = #tpu.pipeline_mode<synchronous>, transform_indices = @transform_1, window_bounds = array<i64: 8, 16>}, {pipeline_mode = #tpu.pipeline_mode<synchronous>, transform_indices = @transform_2, window_bounds = array<i64: 1, 16>}, {pipeline_mode = #tpu.pipeline_mode<synchronous>, transform_indices = @transform_3, window_bounds = array<i64: 16, 32>}, {pipeline_mode = #tpu.pipeline_mode<synchronous>, transform_indices = @transform_4, window_bounds = array<i64: 1, 32>}, {pipeline_mode = #tpu.pipeline_mode<synchronous>, transform_indices = @transform_5, window_bounds = array<i64: 32, 64>}, {pipeline_mode = #tpu.pipeline_mode<synchronous>, transform_indices = @transform_6, window_bounds = array<i64: 1, 64>}, {pipeline_mode = #tpu.pipeline_mode<synchronous>, transform_indices = @transform_7, window_bounds = array<i64: 64, 48>}, {pipeline_mode = #tpu.pipeline_mode<synchronous>, transform_indices = @transform_8, window_bounds = array<i64: 1, 48>}, {transform_indices = @transform_9, window_bounds = array<i64: 8, 48>}]} {
    %c0 = arith.constant 0 : index
    %c0_0 = arith.constant 0 : index
    %0 = vector.load %arg1[%c0, %c0_0] : memref<8x8xf32, #tpu.memory_space<vmem>>, vector<8x8xf32>
    %c0_1 = arith.constant 0 : index
    %c0_2 = arith.constant 0 : index
    %1 = vector.load %arg2[%c0_1, %c0_2] : memref<8x16xf32, #tpu.memory_space<vmem>>, vector<8x16xf32>
    %cst = arith.constant dense<0.000000e+00> : vector<8x16xf32>
    %2 = tpu.matmul %0, %1, %cst {dimension_numbers = #tpu.dot_dimension_numbers<[1], [0], [0], [1], [0, 0, 1, 1], [], []>} : vector<8x8xf32>, vector<8x16xf32>, vector<8x16xf32> -> vector<8x16xf32>
    %c0_3 = arith.constant 0 : index
    %c0_4 = arith.constant 0 : index
    %3 = vector.load %arg3[%c0_3, %c0_4] : memref<1x16xf32, #tpu.memory_space<vmem>>, vector<1x16xf32>
    %4 = vector.broadcast %3 : vector<1x16xf32> to vector<8x16xf32>
    %5 = arith.addf %2, %4 : vector<8x16xf32>
    %6 = math.tanh %5 : vector<8x16xf32>
    %c0_5 = arith.constant 0 : index
    %c0_6 = arith.constant 0 : index
    %7 = vector.load %arg4[%c0_5, %c0_6] : memref<16x32xf32, #tpu.memory_space<vmem>>, vector<16x32xf32>
    %cst_7 = arith.constant dense<0.000000e+00> : vector<8x32xf32>
    %8 = tpu.matmul %6, %7, %cst_7 {dimension_numbers = #tpu.dot_dimension_numbers<[1], [0], [0], [1], [0, 0, 1, 1], [], []>} : vector<8x16xf32>, vector<16x32xf32>, vector<8x32xf32> -> vector<8x32xf32>
    %c0_8 = arith.constant 0 : index
    %c0_9 = arith.constant 0 : index
    %9 = vector.load %arg5[%c0_8, %c0_9] : memref<1x32xf32, #tpu.memory_space<vmem>>, vector<1x32xf32>
    %10 = vector.broadcast %9 : vector<1x32xf32> to vector<8x32xf32>
    %11 = arith.addf %8, %10 : vector<8x32xf32>
    %12 = math.tanh %11 : vector<8x32xf32>
    %c0_10 = arith.constant 0 : index
    %c0_11 = arith.constant 0 : index
    %13 = vector.load %arg6[%c0_10, %c0_11] : memref<32x64xf32, #tpu.memory_space<vmem>>, vector<32x64xf32>
    %cst_12 = arith.constant dense<0.000000e+00> : vector<8x64xf32>
    %14 = tpu.matmul %12, %13, %cst_12 {dimension_numbers = #tpu.dot_dimension_numbers<[1], [0], [0], [1], [0, 0, 1, 1], [], []>} : vector<8x32xf32>, vector<32x64xf32>, vector<8x64xf32> -> vector<8x64xf32>
    %c0_13 = arith.constant 0 : index
    %c0_14 = arith.constant 0 : index
    %15 = vector.load %arg7[%c0_13, %c0_14] : memref<1x64xf32, #tpu.memory_space<vmem>>, vector<1x64xf32>
    %16 = vector.broadcast %15 : vector<1x64xf32> to vector<8x64xf32>
    %17 = arith.addf %14, %16 : vector<8x64xf32>
    %18 = math.tanh %17 : vector<8x64xf32>
    %c0_15 = arith.constant 0 : index
    %c0_16 = arith.constant 0 : index
    %19 = vector.load %arg8[%c0_15, %c0_16] : memref<64x48xf32, #tpu.memory_space<vmem>>, vector<64x48xf32>
    %cst_17 = arith.constant dense<0.000000e+00> : vector<8x48xf32>
    %20 = tpu.matmul %18, %19, %cst_17 {dimension_numbers = #tpu.dot_dimension_numbers<[1], [0], [0], [1], [0, 0, 1, 1], [], []>} : vector<8x64xf32>, vector<64x48xf32>, vector<8x48xf32> -> vector<8x48xf32>
    %c0_18 = arith.constant 0 : index
    %c0_19 = arith.constant 0 : index
    %21 = vector.load %arg9[%c0_18, %c0_19] : memref<1x48xf32, #tpu.memory_space<vmem>>, vector<1x48xf32>
    %22 = vector.broadcast %21 : vector<1x48xf32> to vector<8x48xf32>
    %23 = arith.addf %20, %22 : vector<8x48xf32>
    %c0_20 = arith.constant 0 : index
    %c0_21 = arith.constant 0 : index
    %24 = vector.load %arg10[%c0_20, %c0_21] : memref<8x48xf32, #tpu.memory_space<vmem>>, vector<8x48xf32>
    tpu.vector_store %arg10[%c0_20, %c0_21], %23 {strides = array<i32>} : memref<8x48xf32, #tpu.memory_space<vmem>>, vector<8x48xf32>,
    return
  }
  func.func @transform_0(%arg0: i32) -> (i32, i32) {
    %c0_i32 = arith.constant 0 : i32
    %c0_i32_0 = arith.constant 0 : i32
    return %arg0, %c0_i32 : i32, i32
  }
  func.func @transform_1(%arg0: i32) -> (i32, i32) {
    %c0_i32 = arith.constant 0 : i32
    %c0_i32_0 = arith.constant 0 : i32
    %c0_i32_1 = arith.constant 0 : i32
    return %c0_i32, %c0_i32_0 : i32, i32
  }
  func.func @transform_2(%arg0: i32) -> (i32, i32) {
    %c0_i32 = arith.constant 0 : i32
    %c0_i32_0 = arith.constant 0 : i32
    %c0_i32_1 = arith.constant 0 : i32
    return %c0_i32, %c0_i32_0 : i32, i32
  }
  func.func @transform_3(%arg0: i32) -> (i32, i32) {
    %c0_i32 = arith.constant 0 : i32
    %c0_i32_0 = arith.constant 0 : i32
    %c0_i32_1 = arith.constant 0 : i32
    return %c0_i32, %c0_i32_0 : i32, i32
  }
  func.func @transform_4(%arg0: i32) -> (i32, i32) {
    %c0_i32 = arith.constant 0 : i32
    %c0_i32_0 = arith.constant 0 : i32
    %c0_i32_1 = arith.constant 0 : i32
    return %c0_i32, %c0_i32_0 : i32, i32
  }
  func.func @transform_5(%arg0: i32) -> (i32, i32) {
    %c0_i32 = arith.constant 0 : i32
    %c0_i32_0 = arith.constant 0 : i32
    %c0_i32_1 = arith.constant 0 : i32
    return %c0_i32, %c0_i32_0 : i32, i32
  }
  func.func @transform_6(%arg0: i32) -> (i32, i32) {
    %c0_i32 = arith.constant 0 : i32
    %c0_i32_0 = arith.constant 0 : i32
    %c0_i32_1 = arith.constant 0 : i32
    return %c0_i32, %c0_i32_0 : i32, i32
  }
  func.func @transform_7(%arg0: i32) -> (i32, i32) {
    %c0_i32 = arith.constant 0 : i32
    %c0_i32_0 = arith.constant 0 : i32
    %c0_i32_1 = arith.constant 0 : i32
    return %c0_i32, %c0_i32_0 : i32, i32
  }
  func.func @transform_8(%arg0: i32) -> (i32, i32) {
    %c0_i32 = arith.constant 0 : i32
    %c0_i32_0 = arith.constant 0 : i32
    %c0_i32_1 = arith.constant 0 : i32
    return %c0_i32, %c0_i32_0 : i32, i32
  }
  func.func @transform_9(%arg0: i32) -> (i32, i32) {
    %c0_i32 = arith.constant 0 : i32
    %c0_i32_0 = arith.constant 0 : i32
    return %arg0, %c0_i32 : i32, i32
  }
}

</mosaic_0001>

<llo_original>
// kernel: tpu_custom_call.1
$region0: #{tpu_custom_call.1}
  #allocation0 [shape = 'u32[]', space=smem, size = 0x4, offset = 0x4, fixed_abs, tag = 'smem constant byte address 0x4 - core index']
  #allocation1 [shape = 'u32[144,128]{1,0:T(1,128)}', space=vmem, size = 0x12000, scoped, tag = 'internal scratch']
  %s0 = inlined_call_operand.vmem [shape: f32[8,8], index: 0, kind: input, shape index: {}]
  %s1 = inlined_call_operand.vmem [shape: f32[8,16], index: 1, kind: input, shape index: {}]
  %s2 = inlined_call_operand.vmem [shape: f32[1,16], index: 2, kind: input, shape index: {}]
  %s3 = inlined_call_operand.vmem [shape: f32[16,32], index: 3, kind: input, shape index: {}]
  %s4 = inlined_call_operand.vmem [shape: f32[1,32], index: 4, kind: input, shape index: {}]
  %s5 = inlined_call_operand.vmem [shape: f32[32,64], index: 5, kind: input, shape index: {}]
  %s6 = inlined_call_operand.vmem [shape: f32[1,64], index: 6, kind: input, shape index: {}]
  %s7 = inlined_call_operand.vmem [shape: f32[64,48], index: 7, kind: input, shape index: {}]
  %s8 = inlined_call_operand.vmem [shape: f32[1,48], index: 8, kind: input, shape index: {}]
  %s9 = inlined_call_operand.hbm [shape: f32[8,48], index: 9, kind: output, shape index: {}]
  %s10 = sld [smem:[#allocation0]]
  $region46: #{tpu_custom_call.1} parent=0
    _
  %s12 = ssub.s32 1, %s10
  %s13 = scalar_select 0, %s12, %s10
  $region1: #{tpu_custom_call.1} parent=0
    #allocation2 [shape = 'u8[4096]{0}', space=vmem, size = 0x1000, scoped, tag = 'output window, operand 0, single buffered']
    #allocation3 [shape = 's32[1]{0}', space=sflag, size = 0x4, scoped, tag = 'scoped memory for tpu_custom_call.1']
    %14 = vsyncpa [#allocation3], 0
    // Predicated region
    $region2: #{tpu_custom_call.1} parent=1 // pred_check
      _
    $region3: #{tpu_custom_call.1} parent=1 // pred_check_branch
      %16 = sbr.rel (0) target = $region5
    $region4: #{tpu_custom_call.1} parent=1 // pred_region
      _
    $region5: #{tpu_custom_call.1} parent=1 // pred_fallthru
      _
    // Predicated region
    $region6: #{tpu_custom_call.1} parent=1 // pred_check
      _
    $region7: #{tpu_custom_call.1} parent=1 // pred_check_branch
      %18 = sbr.rel (0) target = $region9
    $region8: #{tpu_custom_call.1} parent=1 // pred_region
      _
    $region9: #{tpu_custom_call.1} parent=1 // pred_fallthru
      _
    // Predicated region
    $region10: #{tpu_custom_call.1} parent=1 // pred_check
      _
    $region11: #{tpu_custom_call.1} parent=1 // pred_check_branch
      %20 = sbr.rel (0) target = $region13
    $region12: #{tpu_custom_call.1} parent=1 // pred_region
      _
    $region13: #{tpu_custom_call.1} parent=1 // pred_fallthru
      _
    // Predicated region
    $region14: #{tpu_custom_call.1} parent=1 // pred_check
      _
    $region15: #{tpu_custom_call.1} parent=1 // pred_check_branch
      %22 = sbr.rel (0) target = $region17
    $region16: #{tpu_custom_call.1} parent=1 // pred_region
      _
    $region17: #{tpu_custom_call.1} parent=1 // pred_fallthru
      _
    // Predicated region
    $region18: #{tpu_custom_call.1} parent=1 // pred_check
      _
    $region19: #{tpu_custom_call.1} parent=1 // pred_check_branch
      %24 = sbr.rel (0) target = $region21
    $region20: #{tpu_custom_call.1} parent=1 // pred_region
      _
    $region21: #{tpu_custom_call.1} parent=1 // pred_fallthru
      _
    // Predicated region
    $region22: #{tpu_custom_call.1} parent=1 // pred_check
      _
    $region23: #{tpu_custom_call.1} parent=1 // pred_check_branch
      %26 = sbr.rel (0) target = $region25
    $region24: #{tpu_custom_call.1} parent=1 // pred_region
      _
    $region25: #{tpu_custom_call.1} parent=1 // pred_fallthru
      _
    // Predicated region
    $region26: #{tpu_custom_call.1} parent=1 // pred_check
      _
    $region27: #{tpu_custom_call.1} parent=1 // pred_check_branch
      %28 = sbr.rel (0) target = $region29
    $region28: #{tpu_custom_call.1} parent=1 // pred_region
      _
    $region29: #{tpu_custom_call.1} parent=1 // pred_fallthru
      _
    // Predicated region
    $region30: #{tpu_custom_call.1} parent=1 // pred_check
      _
    $region31: #{tpu_custom_call.1} parent=1 // pred_check_branch
      %30 = sbr.rel (0) target = $region33
    $region32: #{tpu_custom_call.1} parent=1 // pred_region
      _
    $region33: #{tpu_custom_call.1} parent=1 // pred_fallthru
      _
    // Predicated region
    $region34: #{tpu_custom_call.1} parent=1 // pred_check
      _
    $region35: #{tpu_custom_call.1} parent=1 // pred_check_branch
      %32 = sbr.rel (0) target = $region37
    $region36: #{tpu_custom_call.1} parent=1 // pred_region
      _
    $region37: #{tpu_custom_call.1} parent=1 // pred_fallthru
      _
    %v33 = vld [vmem:[%s0] sm:$0xff]
    %v34 = vld [vmem:[%s1] sm:$0xff]
    %v35 = vld [vmem:[%s2] sm:$0x1]
    %v37 = vlaneseq
    %v38 = vshrl.u32 %v37, 7
    %v39 = vsub.s32 0, %v38
    %v40 = vrot.slane %v35, %v39
    %vm42 = vcmask 64512
    %v44 = vsel %vm42, %v33, 0
    %46 = vmatprep.subr.mxu0 0.0
    %47 = vmatpush1.msra.mxu0 0.0
    %48 = vmatprep.subr.mxu0 0.0
    %49 = vmatpush1.msra.mxu0 0.0
    %50 = vmatprep.subr.mxu0 0.0
    %51 = vmatpush1.msra.mxu0 0.0
    %52 = vmatprep.subr.mxu0 0.0
    %53 = vmatpush1.msra.mxu0 0.0
    %54 = vmatprep.subr.mxu0 0.0
    %55 = vmatpush1.msra.mxu0 0.0
    %56 = vmatprep.subr.mxu0 0.0
    %57 = vmatpush1.msra.mxu0 0.0
    %58 = vmatprep.subr.mxu0 0.0
    %59 = vmatpush1.msra.mxu0 0.0
    %60 = vmatprep.subr.mxu0 0.0
    %61 = vmatpush1.msra.mxu0 0.0
    %62 = vmatprep.subr.mxu0 0.0
    %63 = vmatpush1.msra.mxu0 0.0
    %64 = vmatprep.subr.mxu0 0.0
    %65 = vmatpush1.msra.mxu0 0.0
    %66 = vmatprep.subr.mxu0 0.0
    %67 = vmatpush1.msra.mxu0 0.0
    %68 = vmatprep.subr.mxu0 0.0
    %69 = vmatpush1.msra.mxu0 0.0
    %70 = vmatprep.subr.mxu0 0.0
    %71 = vmatpush1.msra.mxu0 0.0
    %72 = vmatprep.subr.mxu0 0.0
    %73 = vmatpush1.msra.mxu0 0.0
    %74 = vmatprep.subr.mxu0 0.0
    %75 = vmatpush1.msra.mxu0 0.0
    %76 = vmatprep.subr.mxu0 0.0
    %77 = vmatpush1.msra.mxu0 %v34
    %78 = vmatprep.subr.mxu0 0.0
    %79 = vmatpush2.msra.mxu0 0.0
    %80 = vmatprep.subr.mxu0 0.0
    %81 = vmatpush2.msra.mxu0 0.0
    %82 = vmatprep.subr.mxu0 0.0
    %83 = vmatpush2.msra.mxu0 0.0
    %84 = vmatprep.subr.mxu0 0.0
    %85 = vmatpush2.msra.mxu0 0.0
    %86 = vmatprep.subr.mxu0 0.0
    %87 = vmatpush2.msra.mxu0 0.0
    %88 = vmatprep.subr.mxu0 0.0
    %89 = vmatpush2.msra.mxu0 0.0
    %90 = vmatprep.subr.mxu0 0.0
    %91 = vmatpush2.msra.mxu0 0.0
    %92 = vmatprep.subr.mxu0 0.0
    %93 = vmatpush2.msra.mxu0 0.0
    %94 = vmatprep.subr.mxu0 0.0
    %95 = vmatpush2.msra.mxu0 0.0
    %96 = vmatprep.subr.mxu0 0.0
    %97 = vmatpush2.msra.mxu0 0.0
    %98 = vmatprep.subr.mxu0 0.0
    %99 = vmatpush2.msra.mxu0 0.0
    %100 = vmatprep.subr.mxu0 0.0
    %101 = vmatpush2.msra.mxu0 0.0
    %102 = vmatprep.subr.mxu0 0.0
    %103 = vmatpush2.msra.mxu0 0.0
    %104 = vmatprep.subr.mxu0 0.0
    %105 = vmatpush2.msra.mxu0 0.0
    %106 = vmatprep.subr.mxu0 0.0
    %107 = vmatpush2.msra.mxu0 0.0
    %108 = vmatprep.subr.mxu0 0.0
    %109 = vmatpush2.msra.mxu0 0.0
    %110 = vmatprep.mubr.f32.mxu0 0.0
    %111 = vmatmul.mubr.f32.gmra.mxu0 %v44
    %v112 = vpop.f32.mrf.mxu0
    %v113 = vadd.f32 %v40, %v112
    %v114 = vpop.f32.mrf.mxu0
    %115 = vdwg.mxu0
    %v116 = vtanh.pop %v113
    %v117 = vld [vmem:[%s3] sm:$0xff]
    %v118 = vld [vmem:[%s3 + $0x8] sm:$0xff]
    %v119 = vld [vmem:[%s4] sm:$0x1]
    %v121 = vlaneseq
    %v122 = vshrl.u32 %v121, 7
    %v123 = vsub.s32 0, %v122
    %v124 = vrot.slane %v119, %v123
    %vm126 = vcmask 130048
    %v128 = vsel %vm126, %v116, 0
    %130 = vmatprep.subr.mxu0 0.0
    %131 = vmatpush1.msra.mxu0 0.0
    %132 = vmatprep.subr.mxu0 0.0
    %133 = vmatpush1.msra.mxu0 0.0
    %134 = vmatprep.subr.mxu0 0.0
    %135 = vmatpush1.msra.mxu0 0.0
    %136 = vmatprep.subr.mxu0 0.0
    %137 = vmatpush1.msra.mxu0 0.0
    %138 = vmatprep.subr.mxu0 0.0
    %139 = vmatpush1.msra.mxu0 0.0
    %140 = vmatprep.subr.mxu0 0.0
    %141 = vmatpush1.msra.mxu0 0.0
    %142 = vmatprep.subr.mxu0 0.0
    %143 = vmatpush1.msra.mxu0 0.0
    %144 = vmatprep.subr.mxu0 0.0
    %145 = vmatpush1.msra.mxu0 0.0
    %146 = vmatprep.subr.mxu0 0.0
    %147 = vmatpush1.msra.mxu0 0.0
    %148 = vmatprep.subr.mxu0 0.0
    %149 = vmatpush1.msra.mxu0 0.0
    %150 = vmatprep.subr.mxu0 0.0
    %151 = vmatpush1.msra.mxu0 0.0
    %152 = vmatprep.subr.mxu0 0.0
    %153 = vmatpush1.msra.mxu0 0.0
    %154 = vmatprep.subr.mxu0 0.0
    %155 = vmatpush1.msra.mxu0 0.0
    %156 = vmatprep.subr.mxu0 0.0
    %157 = vmatpush1.msra.mxu0 0.0
    %158 = vmatprep.subr.mxu0 0.0
    %159 = vmatpush1.msra.mxu0 %v118
    %160 = vmatprep.subr.mxu0 0.0
    %161 = vmatpush1.msra.mxu0 %v117
    %162 = vmatprep.subr.mxu0 0.0
    %163 = vmatpush2.msra.mxu0 0.0
    %164 = vmatprep.subr.mxu0 0.0
    %165 = vmatpush2.msra.mxu0 0.0
    %166 = vmatprep.subr.mxu0 0.0
    %167 = vmatpush2.msra.mxu0 0.0
    %168 = vmatprep.subr.mxu0 0.0
    %169 = vmatpush2.msra.mxu0 0.0
    %170 = vmatprep.subr.mxu0 0.0
    %171 = vmatpush2.msra.mxu0 0.0
    %172 = vmatprep.subr.mxu0 0.0
    %173 = vmatpush2.msra.mxu0 0.0
    %174 = vmatprep.subr.mxu0 0.0
    %175 = vmatpush2.msra.mxu0 0.0
    %176 = vmatprep.subr.mxu0 0.0
    %177 = vmatpush2.msra.mxu0 0.0
    %178 = vmatprep.subr.mxu0 0.0
    %179 = vmatpush2.msra.mxu0 0.0
    %180 = vmatprep.subr.mxu0 0.0
    %181 = vmatpush2.msra.mxu0 0.0
    %182 = vmatprep.subr.mxu0 0.0
    %183 = vmatpush2.msra.mxu0 0.0
    %184 = vmatprep.subr.mxu0 0.0
    %185 = vmatpush2.msra.mxu0 0.0
    %186 = vmatprep.subr.mxu0 0.0
    %187 = vmatpush2.msra.mxu0 0.0
    %188 = vmatprep.subr.mxu0 0.0
    %189 = vmatpush2.msra.mxu0 0.0
    %190 = vmatprep.subr.mxu0 0.0
    %191 = vmatpush2.msra.mxu0 0.0
    %192 = vmatprep.subr.mxu0 0.0
    %193 = vmatpush2.msra.mxu0 0.0
    %194 = vmatprep.mubr.f32.mxu0 0.0
    %195 = vmatmul.mubr.f32.gmra.mxu0 %v128
    %v196 = vpop.f32.mrf.mxu0
    %v197 = vadd.f32 %v124, %v196
    %v198 = vpop.f32.mrf.mxu0
    %199 = vdwg.mxu0
    %v200 = vtanh.pop %v197
    %v201 = vld [vmem:[%s5] sm:$0xff]
    %v202 = vld [vmem:[%s5 + $0x8] sm:$0xff]
    %v203 = vld [vmem:[%s5 + $0x10] sm:$0xff]
    %v204 = vld [vmem:[%s5 + $0x18] sm:$0xff]
    %v205 = vld [vmem:[%s6] sm:$0x1]
    %v207 = vlaneseq
    %v208 = vshrl.u32 %v207, 7
    %v209 = vsub.s32 0, %v208
    %v210 = vrot.slane %v205, %v209
    %vm212 = vcmask 261120
    %v214 = vsel %vm212, %v200, 0
    %216 = vmatprep.subr.mxu0 0.0
    %217 = vmatpush1.msra.mxu0 0.0
    %218 = vmatprep.subr.mxu0 0.0
    %219 = vmatpush1.msra.mxu0 0.0
    %220 = vmatprep.subr.mxu0 0.0
    %221 = vmatpush1.msra.mxu0 0.0
    %222 = vmatprep.subr.mxu0 0.0
    %223 = vmatpush1.msra.mxu0 0.0
    %224 = vmatprep.subr.mxu0 0.0
    %225 = vmatpush1.msra.mxu0 0.0
    %226 = vmatprep.subr.mxu0 0.0
    %227 = vmatpush1.msra.mxu0 0.0
    %228 = vmatprep.subr.mxu0 0.0
    %229 = vmatpush1.msra.mxu0 0.0
    %230 = vmatprep.subr.mxu0 0.0
    %231 = vmatpush1.msra.mxu0 0.0
    %232 = vmatprep.subr.mxu0 0.0
    %233 = vmatpush1.msra.mxu0 0.0
    %234 = vmatprep.subr.mxu0 0.0
    %235 = vmatpush1.msra.mxu0 0.0
    %236 = vmatprep.subr.mxu0 0.0
    %237 = vmatpush1.msra.mxu0 0.0
    %238 = vmatprep.subr.mxu0 0.0
    %239 = vmatpush1.msra.mxu0 0.0
    %240 = vmatprep.subr.mxu0 0.0
    %241 = vmatpush1.msra.mxu0 %v204
    %242 = vmatprep.subr.mxu0 0.0
    %243 = vmatpush1.msra.mxu0 %v203
    %244 = vmatprep.subr.mxu0 0.0
    %245 = vmatpush1.msra.mxu0 %v202
    %246 = vmatprep.subr.mxu0 0.0
    %247 = vmatpush1.msra.mxu0 %v201
    %248 = vmatprep.subr.mxu0 0.0
    %249 = vmatpush2.msra.mxu0 0.0
    %250 = vmatprep.subr.mxu0 0.0
    %251 = vmatpush2.msra.mxu0 0.0
    %252 = vmatprep.subr.mxu0 0.0
    %253 = vmatpush2.msra.mxu0 0.0
    %254 = vmatprep.subr.mxu0 0.0
    %255 = vmatpush2.msra.mxu0 0.0
    %256 = vmatprep.subr.mxu0 0.0
    %257 = vmatpush2.msra.mxu0 0.0
    %258 = vmatprep.subr.mxu0 0.0
    %259 = vmatpush2.msra.mxu0 0.0
    %260 = vmatprep.subr.mxu0 0.0
    %261 = vmatpush2.msra.mxu0 0.0
    %262 = vmatprep.subr.mxu0 0.0
    %263 = vmatpush2.msra.mxu0 0.0
    %264 = vmatprep.subr.mxu0 0.0
    %265 = vmatpush2.msra.mxu0 0.0
    %266 = vmatprep.subr.mxu0 0.0
    %267 = vmatpush2.msra.mxu0 0.0
    %268 = vmatprep.subr.mxu0 0.0
    %269 = vmatpush2.msra.mxu0 0.0
    %270 = vmatprep.subr.mxu0 0.0
    %271 = vmatpush2.msra.mxu0 0.0
    %272 = vmatprep.subr.mxu0 0.0
    %273 = vmatpush2.msra.mxu0 0.0
    %274 = vmatprep.subr.mxu0 0.0
    %275 = vmatpush2.msra.mxu0 0.0
    %276 = vmatprep.subr.mxu0 0.0
    %277 = vmatpush2.msra.mxu0 0.0
    %278 = vmatprep.subr.mxu0 0.0
    %279 = vmatpush2.msra.mxu0 0.0
    %280 = vmatprep.mubr.f32.mxu0 0.0
    %281 = vmatmul.mubr.f32.gmra.mxu0 %v214
    %v282 = vpop.f32.mrf.mxu0
    %v283 = vadd.f32 %v210, %v282
    %v284 = vpop.f32.mrf.mxu0
    %285 = vdwg.mxu0
    %v286 = vtanh.pop %v283
    %v287 = vld [vmem:[%s7] sm:$0xff]
    %v288 = vld [vmem:[%s7 + $0x8] sm:$0xff]
    %v289 = vld [vmem:[%s7 + $0x10] sm:$0xff]
    %v290 = vld [vmem:[%s7 + $0x18] sm:$0xff]
    %v291 = vld [vmem:[%s7 + $0x20] sm:$0xff]
    %v292 = vld [vmem:[%s7 + $0x28] sm:$0xff]
    %v293 = vld [vmem:[%s7 + $0x30] sm:$0xff]
    %v294 = vld [vmem:[%s7 + $0x38] sm:$0xff]
    %v295 = vld [vmem:[%s8] sm:$0x1]
    %v297 = vlaneseq
    %v298 = vshrl.u32 %v297, 7
    %v299 = vsub.s32 0, %v298
    %v300 = vrot.slane %v295, %v299
    %vm302 = vcmask 523264
    %v304 = vsel %vm302, %v286, 0
    %306 = vmatprep.subr.mxu0 0.0
    %307 = vmatpush1.msra.mxu0 0.0
    %308 = vmatprep.subr.mxu0 0.0
    %309 = vmatpush1.msra.mxu0 0.0
    %310 = vmatprep.subr.mxu0 0.0
    %311 = vmatpush1.msra.mxu0 0.0
    %312 = vmatprep.subr.mxu0 0.0
    %313 = vmatpush1.msra.mxu0 0.0
    %314 = vmatprep.subr.mxu0 0.0
    %315 = vmatpush1.msra.mxu0 0.0
    %316 = vmatprep.subr.mxu0 0.0
    %317 = vmatpush1.msra.mxu0 0.0
    %318 = vmatprep.subr.mxu0 0.0
    %319 = vmatpush1.msra.mxu0 0.0
    %320 = vmatprep.subr.mxu0 0.0
    %321 = vmatpush1.msra.mxu0 0.0
    %322 = vmatprep.subr.mxu0 0.0
    %323 = vmatpush1.msra.mxu0 %v294
    %324 = vmatprep.subr.mxu0 0.0
    %325 = vmatpush1.msra.mxu0 %v293
    %326 = vmatprep.subr.mxu0 0.0
    %327 = vmatpush1.msra.mxu0 %v292
    %328 = vmatprep.subr.mxu0 0.0
    %329 = vmatpush1.msra.mxu0 %v291
    %330 = vmatprep.subr.mxu0 0.0
    %331 = vmatpush1.msra.mxu0 %v290
    %332 = vmatprep.subr.mxu0 0.0
    %333 = vmatpush1.msra.mxu0 %v289
    %334 = vmatprep.subr.mxu0 0.0
    %335 = vmatpush1.msra.mxu0 %v288
    %336 = vmatprep.subr.mxu0 0.0
    %337 = vmatpush1.msra.mxu0 %v287
    %338 = vmatprep.subr.mxu0 0.0
    %339 = vmatpush2.msra.mxu0 0.0
    %340 = vmatprep.subr.mxu0 0.0
    %341 = vmatpush2.msra.mxu0 0.0
    %342 = vmatprep.subr.mxu0 0.0
    %343 = vmatpush2.msra.mxu0 0.0
    %344 = vmatprep.subr.mxu0 0.0
    %345 = vmatpush2.msra.mxu0 0.0
    %346 = vmatprep.subr.mxu0 0.0
    %347 = vmatpush2.msra.mxu0 0.0
    %348 = vmatprep.subr.mxu0 0.0
    %349 = vmatpush2.msra.mxu0 0.0
    %350 = vmatprep.subr.mxu0 0.0
    %351 = vmatpush2.msra.mxu0 0.0
    %352 = vmatprep.subr.mxu0 0.0
    %353 = vmatpush2.msra.mxu0 0.0
    %354 = vmatprep.subr.mxu0 0.0
    %355 = vmatpush2.msra.mxu0 0.0
    %356 = vmatprep.subr.mxu0 0.0
    %357 = vmatpush2.msra.mxu0 0.0
    %358 = vmatprep.subr.mxu0 0.0
    %359 = vmatpush2.msra.mxu0 0.0
    %360 = vmatprep.subr.mxu0 0.0
    %361 = vmatpush2.msra.mxu0 0.0
    %362 = vmatprep.subr.mxu0 0.0
    %363 = vmatpush2.msra.mxu0 0.0
    %364 = vmatprep.subr.mxu0 0.0
    %365 = vmatpush2.msra.mxu0 0.0
    %366 = vmatprep.subr.mxu0 0.0
    %367 = vmatpush2.msra.mxu0 0.0
    %368 = vmatprep.subr.mxu0 0.0
    %369 = vmatpush2.msra.mxu0 0.0
    %370 = vmatprep.mubr.f32.mxu0 0.0
    %371 = vmatmul.mubr.f32.gmra.mxu0 %v304
    %v372 = vpop.f32.mrf.mxu0
    %v373 = vadd.f32 %v300, %v372
    %v374 = vpop.f32.mrf.mxu0
    %375 = vdwg.mxu0
    %vm376 = vcmask 392192
    %377 = vst.msk [vmem:[#allocation2] sm:$0xff] %vm376, %v373
    // Predicated region
    $region38: #{tpu_custom_call.1} parent=1 // pred_check
      _
    $region39: #{tpu_custom_call.1} parent=1 // pred_check_branch
      %379 = sbr.rel (0) target = $region41
    $region40: #{tpu_custom_call.1} parent=1 // pred_region
      %s381 = ssub.s32 128, 128
      %382 = vsyncadd [#allocation3], %s381
      %s384 = sshll.u32 [#allocation2], 4
      %s385 = int_to_ptr.vmem [resolvable:$true] %s384
      %387 = dma.vmem_to_hbm [thread:$0]  %s385, 128, %s9, [#allocation3]
    $region41: #{tpu_custom_call.1} parent=1 // pred_fallthru
      _
    // Predicated region
    $region42: #{tpu_custom_call.1} parent=1 // pred_check
      _
    $region43: #{tpu_custom_call.1} parent=1 // pred_check_branch
      %389 = sbr.rel (0) target = $region45
    $region44: #{tpu_custom_call.1} parent=1 // pred_region
      %390 = dma.done [#allocation3], 128
    $region45: #{tpu_custom_call.1} parent=1 // pred_fallthru
      _
    %391 = vsyncpa [#allocation3], 1

</llo_original>
